<compile_context>
chip_gen: v5e
topology: v5e:2x2
jax: 0.10.0
libtpu: 0.0.40
codegen_flags: <defaults>
</compile_context>

<pallas_src>
import math
import jax
import jax.numpy as jnp
from jax import lax
from jax.experimental import pallas as pl
from jax.experimental.pallas import tpu as pltpu

# ---- model hyper-parameters (small, consistent with the module) -------------
B = 2        # batch
S = 8        # sequence length
D = 32       # d_model (== EncoderLayer.size)
H = 4        # attention heads
DK = D // H  # per-head dim
DF = 64      # feed-forward hidden dim
EPS = 1e-6   # LayerNorm eps (matches the PyTorch module)

N = B * S            # 16 token rows processed together in one invocation
LANES = 128
MASK_NEG = -1e9

# ---- parameter-slab layout (rows x 128 lanes, everything lane-0 aligned) ----
R_WQKV = 0                 # rows [0,32)   lanes [0,96)   fused (scaled-Q | K | V)
R_WO   = R_WQKV + D        # rows [32,64)  lanes [0,32)   Wo
R_W1   = R_WO + D          # rows [64,96)  lanes [0,64)   W1
R_W2   = R_W1 + D          # rows [96,160) lanes [0,32)   W2
R_LN1A = R_W2 + DF         # row 160       lanes [0,32)
R_LN1B = R_LN1A + 1        # row 161
R_LN2A = R_LN1A + 2        # row 162
R_LN2B = R_LN1A + 3        # row 163
R_BQKV = R_LN1A + 4        # row 164       lanes [0,96)
R_BO   = R_LN1A + 5        # row 165       lanes [0,32)
R_B1   = R_LN1A + 6        # row 166       lanes [0,64)
R_B2   = R_LN1A + 7        # row 167       lanes [0,32)
SLAB_ROWS = R_B2 + 1       # 168 (multiple of 8)


def _recip(x):
    """1/x via EUP approx reciprocal + one Newton step (~f32 accurate).
    Keeps the divides off the VALU critical path."""
    r = pl.reciprocal(x, approx=True)
    return r * (2.0 - x * r)


def _layer_norm(v, a, b):
    """Exact semantics of the PyTorch LayerNorm:
       a * (x - mean) / (std + eps) + b, with torch.std (unbiased, N-1)."""
    mean = jnp.mean(v, axis=-1, keepdims=True)
    var = jnp.sum((v - mean) ** 2, axis=-1, keepdims=True) / (D - 1)
    std = jnp.sqrt(var)
    return a * (v - mean) * _recip(std + EPS) + b


def encoder_layer_kernel(x_ref, bias_ref, p_ref, out_ref, attn_scr):
    x = x_ref[...]                # (N, D)    token rows, batch-major
    mask_bias = bias_ref[...]     # (N, N)    block-diagonal + padding, additive

    # ---- static slices of the single parameter slab (all start at lane 0) --
    ln1_a = p_ref[R_LN1A:R_LN1A + 1, 0:D]         # (1, D)
    ln1_b = p_ref[R_LN1B:R_LN1B + 1, 0:D]
    ln2_a = p_ref[R_LN2A:R_LN2A + 1, 0:D]
    ln2_b = p_ref[R_LN2B:R_LN2B + 1, 0:D]
    wqkv  = p_ref[R_WQKV:R_WQKV + D, 0:3 * D]     # (D, 3D)  Q cols pre-scaled
    bqkv  = p_ref[R_BQKV:R_BQKV + 1, 0:3 * D]     # (1, 3D)
    wo    = p_ref[R_WO:R_WO + D, 0:D]             # (D, D)
    bo    = p_ref[R_BO:R_BO + 1, 0:D]             # (1, D)
    w1    = p_ref[R_W1:R_W1 + D, 0:DF]            # (D, DF)
    b1    = p_ref[R_B1:R_B1 + 1, 0:DF]            # (1, DF)
    w2    = p_ref[R_W2:R_W2 + DF, 0:D]            # (DF, D)
    b2    = p_ref[R_B2:R_B2 + 1, 0:D]             # (1, D)

    # ---- sublayer 0: x + self_attn(norm(x), norm(x), norm(x), mask) --------
    xn = _layer_norm(x, ln1_a, ln1_b)

    # fused (scaled-Q | K | V) projection: one MXU matmul
    qkv = jnp.dot(xn, wqkv, preferred_element_type=jnp.float32) + bqkv   # (N, 3D)

    # per-head attention, batches merged along sublanes; block-diagonal mask
    # bias keeps the two batches from attending to each other.
    for h in range(H):
        q_h = qkv[:, h * DK:(h + 1) * DK]                  # (N, DK), pre-scaled
        k_h = qkv[:, D + h * DK:D + (h + 1) * DK]          # (N, DK)
        v_h = qkv[:, 2 * D + h * DK:2 * D + (h + 1) * DK]  # (N, DK)

        s = lax.dot_general(q_h, k_h, (((1,), (1,)), ((), ())),
                            preferred_element_type=jnp.float32)          # (N, N)
        s = s + mask_bias

        m = jnp.max(s, axis=-1, keepdims=True)
        p = jnp.exp(s - m)
        p = p * _recip(jnp.sum(p, axis=-1, keepdims=True))

        ctx = jnp.dot(p, v_h, preferred_element_type=jnp.float32)        # (N, DK)
        attn_scr[:, h * DK:(h + 1) * DK] = ctx        # direct VMEM write, no concat

    attn_cat = attn_scr[...]                                             # (N, D)
    attn_out = jnp.dot(attn_cat, wo, preferred_element_type=jnp.float32) + bo
    x1 = x + attn_out                                                    # residual 1

    # ---- sublayer 1: x + feed_forward(norm(x)) ------------------------------
    xn2 = _layer_norm(x1, ln2_a, ln2_b)
    h1 = jnp.dot(xn2, w1, preferred_element_type=jnp.float32) + b1
    h1 = jnp.maximum(h1, 0.0)                                            # ReLU
    ff = jnp.dot(h1, w2, preferred_element_type=jnp.float32) + b2
    out_ref[...] = (x1 + ff).astype(out_ref.dtype)


# ---- one-time parameter packing (hoisted out of the per-call path) ----------
def pack_params(params):
    (ln1_a, ln1_b, wq, bq, wk, bk, wv, bv, wo, bo,
     ln2_a, ln2_b, w1, b1, w2, b2) = params
    scale = 1.0 / math.sqrt(DK)                     # fold 1/sqrt(dk) into Q
    wqkv = jnp.concatenate([wq * scale, wk, wv], axis=1)   # (D, 3D)
    bqkv = jnp.concatenate([bq * scale, bk, bv], axis=1)   # (1, 3D)

    slab = jnp.zeros((SLAB_ROWS, LANES), jnp.float32)
    slab = slab.at[R_WQKV:R_WQKV + D, 0:3 * D].set(wqkv)
    slab = slab.at[R_WO:R_WO + D, 0:D].set(wo)
    slab = slab.at[R_W1:R_W1 + D, 0:DF].set(w1)
    slab = slab.at[R_W2:R_W2 + DF, 0:D].set(w2)
    slab = slab.at[R_LN1A:R_LN1A + 1, 0:D].set(ln1_a)
    slab = slab.at[R_LN1B:R_LN1B + 1, 0:D].set(ln1_b)
    slab = slab.at[R_LN2A:R_LN2A + 1, 0:D].set(ln2_a)
    slab = slab.at[R_LN2B:R_LN2B + 1, 0:D].set(ln2_b)
    slab = slab.at[R_BQKV:R_BQKV + 1, 0:3 * D].set(bqkv)
    slab = slab.at[R_BO:R_BO + 1, 0:D].set(bo)
    slab = slab.at[R_B1:R_B1 + 1, 0:DF].set(b1)
    slab = slab.at[R_B2:R_B2 + 1, 0:D].set(b2)
    return slab


def attention_bias(mask):
    """(B,S,S) 0/1 mask -> (N,N) additive bias: block-diagonal (no cross-batch
    attention) with -1e9 at masked key positions, 0 at valid ones."""
    blocks = jnp.where(mask > 0.5, 0.0, MASK_NEG).astype(jnp.float32)   # (B,S,S)
    bias = jnp.full((N, N), MASK_NEG, dtype=jnp.float32)
    for b in range(B):
        bias = bias.at[b * S:(b + 1) * S, b * S:(b + 1) * S].set(blocks[b])
    return bias


def encoder_layer(x, mask, param_slab):
    x2d = x.reshape(N, D)
    bias = attention_bias(mask)

    # grid-less single invocation: 3 inputs (activations, mask bias, one
    # lane-dense parameter slab), everything resident in VMEM, no
    # double-buffering of constant weights.
    vmem = pl.BlockSpec(memory_space=pltpu.MemorySpace.VMEM)

    y = pl.pallas_call(
        encoder_layer_kernel,
        out_shape=jax.ShapeDtypeStruct((N, D), x.dtype),
        in_specs=[vmem, vmem, vmem],
        out_specs=vmem,
        scratch_shapes=[pltpu.VMEM((N, D), jnp.float32)],
    )(x2d, bias, param_slab)

    return y.reshape(B, S, D)


# ---- pure-JAX reference (same math, for correctness check) ------------------
def encoder_layer_ref(x, mask, params):
    (ln1_a, ln1_b, wq, bq, wk, bk, wv, bv, wo, bo,
     ln2_a, ln2_b, w1, b1, w2, b2) = params

    def ln(v, a, b):
        mean = jnp.mean(v, axis=-1, keepdims=True)
        var = jnp.sum((v - mean) ** 2, axis=-1, keepdims=True) / (D - 1)
        return a * (v - mean) / (jnp.sqrt(var) + EPS) + b

    xn = ln(x, ln1_a, ln1_b)
    q = xn @ wq + bq
    k = xn @ wk + bk
    v = xn @ wv + bv
    q = q.reshape(B, S, H, DK).transpose(0, 2, 1, 3)
    k = k.reshape(B, S, H, DK).transpose(0, 2, 1, 3)
    v = v.reshape(B, S, H, DK).transpose(0, 2, 1, 3)
    scores = jnp.einsum("bhqd,bhkd->bhqk", q, k) / math.sqrt(DK)
    scores = jnp.where(mask[:, None, :, :] == 0, -1e9, scores)
    p = jax.nn.softmax(scores, axis=-1)
    attn = jnp.einsum("bhqk,bhkd->bhqd", p, v).transpose(0, 2, 1, 3).reshape(B, S, D)
    x1 = x + (attn @ wo + bo)
    xn2 = ln(x1, ln2_a, ln2_b)
    ff = jnp.maximum(xn2 @ w1 + b1, 0.0) @ w2 + b2
    return x1 + ff


if __name__ == "__main__":
    key = jax.random.PRNGKey(0)
    ks = jax.random.split(key, 12)

    x = jax.random.normal(ks[0], (B, S, D), dtype=jnp.float32)

    # padding-style source mask: batch 0 has all 8 valid tokens, batch 1 has 6
    lengths = jnp.array([8, 6])
    key_valid = (jnp.arange(S)[None, :] < lengths[:, None]).astype(jnp.float32)  # (B, S)
    mask = jnp.broadcast_to(key_valid[:, None, :], (B, S, S)).astype(jnp.float32)

    def init(k, shape, scale=0.05):
        return scale * jax.random.normal(k, shape, dtype=jnp.float32)

    params = (
        jnp.ones((1, D), jnp.float32), jnp.zeros((1, D), jnp.float32),  # ln1 a, b
        init(ks[1], (D, D)), init(ks[2], (1, D)),                       # wq, bq
        init(ks[3], (D, D)), init(ks[4], (1, D)),                       # wk, bk
        init(ks[5], (D, D)), init(ks[6], (1, D)),                       # wv, bv
        init(ks[7], (D, D)), init(ks[8], (1, D)),                       # wo, bo
        jnp.ones((1, D), jnp.float32), jnp.zeros((1, D), jnp.float32),  # ln2 a, b
        init(ks[9], (D, DF)), jnp.zeros((1, DF), jnp.float32),          # w1, b1
        init(ks[10], (DF, D)), jnp.zeros((1, D), jnp.float32),          # w2, b2
    )

    # one-time parameter packing (NOT part of the per-call path)
    param_slab = jax.block_until_ready(pack_params(params))

    out = encoder_layer(x, mask, param_slab)
    out = jax.block_until_ready(out)

    ref = encoder_layer_ref(x, mask, params)
    assert out.shape == (B, S, D)
    # slightly looser than f32 exact to accommodate the Newton-refined
    # EUP reciprocal used for the softmax / LayerNorm denominators
    assert jnp.allclose(out, ref, atol=2e-4, rtol=2e-4), "mismatch vs reference"

    print("KERNEL_OK")
</pallas_src>

<mosaic_0001>
module attributes {stable_mosaic.version = 11 : i64} {
  func.func @encoder_layer_kernel(%arg0: memref<16x32xf32, #tpu.memory_space<vmem>>, %arg1: memref<16x16xf32, #tpu.memory_space<vmem>>, %arg2: memref<168x128xf32, #tpu.memory_space<vmem>>, %arg3: memref<16x32xf32, #tpu.memory_space<vmem>>, %arg4: memref<16x32xf32, #tpu.memory_space<vmem>>) attributes {dimension_semantics = [], scalar_prefetch = 0 : i64, scratch_operands = 1 : i64, tpu.core_type = #tpu.core_type<tc>} {
    %c0 = arith.constant 0 : index
    %c0_0 = arith.constant 0 : index
    %0 = vector.load %arg0[%c0, %c0_0] : memref<16x32xf32, #tpu.memory_space<vmem>>, vector<16x32xf32>
    %c0_1 = arith.constant 0 : index
    %c0_2 = arith.constant 0 : index
    %1 = vector.load %arg1[%c0_1, %c0_2] : memref<16x16xf32, #tpu.memory_space<vmem>>, vector<16x16xf32>
    %c160 = arith.constant 160 : index
    %c0_3 = arith.constant 0 : index
    %2 = vector.load %arg2[%c160, %c0_3] : memref<168x128xf32, #tpu.memory_space<vmem>>, vector<1x32xf32>
    %c161 = arith.constant 161 : index
    %c0_4 = arith.constant 0 : index
    %3 = vector.load %arg2[%c161, %c0_4] : memref<168x128xf32, #tpu.memory_space<vmem>>, vector<1x32xf32>
    %c162 = arith.constant 162 : index
    %c0_5 = arith.constant 0 : index
    %4 = vector.load %arg2[%c162, %c0_5] : memref<168x128xf32, #tpu.memory_space<vmem>>, vector<1x32xf32>
    %c163 = arith.constant 163 : index
    %c0_6 = arith.constant 0 : index
    %5 = vector.load %arg2[%c163, %c0_6] : memref<168x128xf32, #tpu.memory_space<vmem>>, vector<1x32xf32>
    %c0_7 = arith.constant 0 : index
    %c0_8 = arith.constant 0 : index
    %6 = vector.load %arg2[%c0_7, %c0_8] : memref<168x128xf32, #tpu.memory_space<vmem>>, vector<32x96xf32>
    %c164 = arith.constant 164 : index
    %c0_9 = arith.constant 0 : index
    %7 = vector.load %arg2[%c164, %c0_9] : memref<168x128xf32, #tpu.memory_space<vmem>>, vector<1x96xf32>
    %c32 = arith.constant 32 : index
    %c0_10 = arith.constant 0 : index
    %8 = vector.load %arg2[%c32, %c0_10] : memref<168x128xf32, #tpu.memory_space<vmem>>, vector<32x32xf32>
    %c165 = arith.constant 165 : index
    %c0_11 = arith.constant 0 : index
    %9 = vector.load %arg2[%c165, %c0_11] : memref<168x128xf32, #tpu.memory_space<vmem>>, vector<1x32xf32>
    %c64 = arith.constant 64 : index
    %c0_12 = arith.constant 0 : index
    %10 = vector.load %arg2[%c64, %c0_12] : memref<168x128xf32, #tpu.memory_space<vmem>>, vector<32x64xf32>
    %c166 = arith.constant 166 : index
    %c0_13 = arith.constant 0 : index
    %11 = vector.load %arg2[%c166, %c0_13] : memref<168x128xf32, #tpu.memory_space<vmem>>, vector<1x64xf32>
    %c96 = arith.constant 96 : index
    %c0_14 = arith.constant 0 : index
    %12 = vector.load %arg2[%c96, %c0_14] : memref<168x128xf32, #tpu.memory_space<vmem>>, vector<64x32xf32>
    %c167 = arith.constant 167 : index
    %c0_15 = arith.constant 0 : index
    %13 = vector.load %arg2[%c167, %c0_15] : memref<168x128xf32, #tpu.memory_space<vmem>>, vector<1x32xf32>
    %cst = arith.constant dense<0.000000e+00> : vector<16xf32>
    %14 = vector.multi_reduction <add>, %0, %cst [1] : vector<16x32xf32> to vector<16xf32>
    %15 = vector.shape_cast %14 : vector<16xf32> to vector<16x1xf32>
    %cst_16 = arith.constant 3.200000e+01 : f32
    %16 = vector.broadcast %cst_16 : f32 to vector<16x1xf32>
    %17 = arith.divf %15, %16 : vector<16x1xf32>
    %18 = vector.broadcast %17 : vector<16x1xf32> to vector<16x32xf32>
    %19 = arith.subf %0, %18 : vector<16x32xf32>
    %20 = arith.mulf %19, %19 : vector<16x32xf32>
    %cst_17 = arith.constant dense<0.000000e+00> : vector<16xf32>
    %21 = vector.multi_reduction <add>, %20, %cst_17 [1] : vector<16x32xf32> to vector<16xf32>
    %22 = vector.shape_cast %21 : vector<16xf32> to vector<16x1xf32>
    %cst_18 = arith.constant 3.100000e+01 : f32
    %23 = vector.broadcast %cst_18 : f32 to vector<16x1xf32>
    %24 = arith.divf %22, %23 : vector<16x1xf32>
    %25 = math.sqrt %24 : vector<16x1xf32>
    %26 = vector.broadcast %17 : vector<16x1xf32> to vector<16x32xf32>
    %27 = arith.subf %0, %26 : vector<16x32xf32>
    %28 = vector.broadcast %2 : vector<1x32xf32> to vector<16x32xf32>
    %29 = arith.mulf %28, %27 : vector<16x32xf32>
    %cst_19 = arith.constant 9.99999997E-7 : f32
    %30 = vector.broadcast %cst_19 : f32 to vector<16x1xf32>
    %31 = arith.addf %25, %30 : vector<16x1xf32>
    %32 = tpu.reciprocal %31 {approx = true} : vector<16x1xf32> -> vector<16x1xf32>
    %33 = arith.mulf %31, %32 : vector<16x1xf32>
    %cst_20 = arith.constant 2.000000e+00 : f32
    %34 = vector.broadcast %cst_20 : f32 to vector<16x1xf32>
    %35 = arith.subf %34, %33 : vector<16x1xf32>
    %36 = arith.mulf %32, %35 : vector<16x1xf32>
    %37 = vector.broadcast %36 : vector<16x1xf32> to vector<16x32xf32>
    %38 = arith.mulf %29, %37 : vector<16x32xf32>
    %39 = vector.broadcast %3 : vector<1x32xf32> to vector<16x32xf32>
    %40 = arith.addf %38, %39 : vector<16x32xf32>
    %cst_21 = arith.constant dense<0.000000e+00> : vector<16x96xf32>
    %41 = tpu.matmul %40, %6, %cst_21 {dimension_numbers = #tpu.dot_dimension_numbers<[1], [0], [0], [1], [0, 0, 1, 1], [], []>} : vector<16x32xf32>, vector<32x96xf32>, vector<16x96xf32> -> vector<16x96xf32>
    %42 = vector.broadcast %7 : vector<1x96xf32> to vector<16x96xf32>
    %43 = arith.addf %41, %42 : vector<16x96xf32>
    %44 = vector.extract_strided_slice %43 {offsets = [0, 0], sizes = [16, 8], strides = [1, 1]} : vector<16x96xf32> to vector<16x8xf32>
    %45 = vector.extract_strided_slice %43 {offsets = [0, 32], sizes = [16, 8], strides = [1, 1]} : vector<16x96xf32> to vector<16x8xf32>
    %46 = vector.extract_strided_slice %43 {offsets = [0, 64], sizes = [16, 8], strides = [1, 1]} : vector<16x96xf32> to vector<16x8xf32>
    %cst_22 = arith.constant dense<0.000000e+00> : vector<16x16xf32>
    %47 = tpu.matmul %44, %45, %cst_22 {dimension_numbers = #tpu.dot_dimension_numbers<[1], [1], [0], [0], [0, 0, 1, 0], [], []>} : vector<16x8xf32>, vector<16x8xf32>, vector<16x16xf32> -> vector<16x16xf32>
    %48 = arith.addf %47, %1 : vector<16x16xf32>
    %cst_23 = arith.constant dense<0xFF800000> : vector<16xf32>
    %49 = vector.multi_reduction <maximumf>, %48, %cst_23 [1] : vector<16x16xf32> to vector<16xf32>
    %50 = vector.shape_cast %49 : vector<16xf32> to vector<16x1xf32>
    %51 = vector.broadcast %50 : vector<16x1xf32> to vector<16x16xf32>
    %52 = arith.subf %48, %51 : vector<16x16xf32>
    %53 = math.exp %52 : vector<16x16xf32>
    %cst_24 = arith.constant dense<0.000000e+00> : vector<16xf32>
    %54 = vector.multi_reduction <add>, %53, %cst_24 [1] : vector<16x16xf32> to vector<16xf32>
    %55 = vector.shape_cast %54 : vector<16xf32> to vector<16x1xf32>
    %56 = tpu.reciprocal %55 {approx = true} : vector<16x1xf32> -> vector<16x1xf32>
    %57 = arith.mulf %55, %56 : vector<16x1xf32>
    %cst_25 = arith.constant 2.000000e+00 : f32
    %58 = vector.broadcast %cst_25 : f32 to vector<16x1xf32>
    %59 = arith.subf %58, %57 : vector<16x1xf32>
    %60 = arith.mulf %56, %59 : vector<16x1xf32>
    %61 = vector.broadcast %60 : vector<16x1xf32> to vector<16x16xf32>
    %62 = arith.mulf %53, %61 : vector<16x16xf32>
    %cst_26 = arith.constant dense<0.000000e+00> : vector<16x8xf32>
    %63 = tpu.matmul %62, %46, %cst_26 {dimension_numbers = #tpu.dot_dimension_numbers<[1], [0], [0], [1], [0, 0, 1, 1], [], []>} : vector<16x16xf32>, vector<16x8xf32>, vector<16x8xf32> -> vector<16x8xf32>
    %c0_27 = arith.constant 0 : index
    %c0_28 = arith.constant 0 : index
    %64 = vector.load %arg4[%c0_27, %c0_28] : memref<16x32xf32, #tpu.memory_space<vmem>>, vector<16x8xf32>
    tpu.vector_store %arg4[%c0_27, %c0_28], %63 {strides = array<i32>} : memref<16x32xf32, #tpu.memory_space<vmem>>, vector<16x8xf32>,
    %65 = vector.extract_strided_slice %43 {offsets = [0, 8], sizes = [16, 8], strides = [1, 1]} : vector<16x96xf32> to vector<16x8xf32>
    %66 = vector.extract_strided_slice %43 {offsets = [0, 40], sizes = [16, 8], strides = [1, 1]} : vector<16x96xf32> to vector<16x8xf32>
    %67 = vector.extract_strided_slice %43 {offsets = [0, 72], sizes = [16, 8], strides = [1, 1]} : vector<16x96xf32> to vector<16x8xf32>
    %cst_29 = arith.constant dense<0.000000e+00> : vector<16x16xf32>
    %68 = tpu.matmul %65, %66, %cst_29 {dimension_numbers = #tpu.dot_dimension_numbers<[1], [1], [0], [0], [0, 0, 1, 0], [], []>} : vector<16x8xf32>, vector<16x8xf32>, vector<16x16xf32> -> vector<16x16xf32>
    %69 = arith.addf %68, %1 : vector<16x16xf32>
    %cst_30 = arith.constant dense<0xFF800000> : vector<16xf32>
    %70 = vector.multi_reduction <maximumf>, %69, %cst_30 [1] : vector<16x16xf32> to vector<16xf32>
    %71 = vector.shape_cast %70 : vector<16xf32> to vector<16x1xf32>
    %72 = vector.broadcast %71 : vector<16x1xf32> to vector<16x16xf32>
    %73 = arith.subf %69, %72 : vector<16x16xf32>
    %74 = math.exp %73 : vector<16x16xf32>
    %cst_31 = arith.constant dense<0.000000e+00> : vector<16xf32>
    %75 = vector.multi_reduction <add>, %74, %cst_31 [1] : vector<16x16xf32> to vector<16xf32>
    %76 = vector.shape_cast %75 : vector<16xf32> to vector<16x1xf32>
    %77 = tpu.reciprocal %76 {approx = true} : vector<16x1xf32> -> vector<16x1xf32>
    %78 = arith.mulf %76, %77 : vector<16x1xf32>
    %cst_32 = arith.constant 2.000000e+00 : f32
    %79 = vector.broadcast %cst_32 : f32 to vector<16x1xf32>
    %80 = arith.subf %79, %78 : vector<16x1xf32>
    %81 = arith.mulf %77, %80 : vector<16x1xf32>
    %82 = vector.broadcast %81 : vector<16x1xf32> to vector<16x16xf32>
    %83 = arith.mulf %74, %82 : vector<16x16xf32>
    %cst_33 = arith.constant dense<0.000000e+00> : vector<16x8xf32>
    %84 = tpu.matmul %83, %67, %cst_33 {dimension_numbers = #tpu.dot_dimension_numbers<[1], [0], [0], [1], [0, 0, 1, 1], [], []>} : vector<16x16xf32>, vector<16x8xf32>, vector<16x8xf32> -> vector<16x8xf32>
    %c0_34 = arith.constant 0 : index
    %c8 = arith.constant 8 : index
    %85 = vector.load %arg4[%c0_34, %c8] : memref<16x32xf32, #tpu.memory_space<vmem>>, vector<16x8xf32>
    tpu.vector_store %arg4[%c0_34, %c8], %84 {strides = array<i32>} : memref<16x32xf32, #tpu.memory_space<vmem>>, vector<16x8xf32>,
    %86 = vector.extract_strided_slice %43 {offsets = [0, 16], sizes = [16, 8], strides = [1, 1]} : vector<16x96xf32> to vector<16x8xf32>
    %87 = vector.extract_strided_slice %43 {offsets = [0, 48], sizes = [16, 8], strides = [1, 1]} : vector<16x96xf32> to vector<16x8xf32>
    %88 = vector.extract_strided_slice %43 {offsets = [0, 80], sizes = [16, 8], strides = [1, 1]} : vector<16x96xf32> to vector<16x8xf32>
    %cst_35 = arith.constant dense<0.000000e+00> : vector<16x16xf32>
    %89 = tpu.matmul %86, %87, %cst_35 {dimension_numbers = #tpu.dot_dimension_numbers<[1], [1], [0], [0], [0, 0, 1, 0], [], []>} : vector<16x8xf32>, vector<16x8xf32>, vector<16x16xf32> -> vector<16x16xf32>
    %90 = arith.addf %89, %1 : vector<16x16xf32>
    %cst_36 = arith.constant dense<0xFF800000> : vector<16xf32>
    %91 = vector.multi_reduction <maximumf>, %90, %cst_36 [1] : vector<16x16xf32> to vector<16xf32>
    %92 = vector.shape_cast %91 : vector<16xf32> to vector<16x1xf32>
    %93 = vector.broadcast %92 : vector<16x1xf32> to vector<16x16xf32>
    %94 = arith.subf %90, %93 : vector<16x16xf32>
    %95 = math.exp %94 : vector<16x16xf32>
    %cst_37 = arith.constant dense<0.000000e+00> : vector<16xf32>
    %96 = vector.multi_reduction <add>, %95, %cst_37 [1] : vector<16x16xf32> to vector<16xf32>
    %97 = vector.shape_cast %96 : vector<16xf32> to vector<16x1xf32>
    %98 = tpu.reciprocal %97 {approx = true} : vector<16x1xf32> -> vector<16x1xf32>
    %99 = arith.mulf %97, %98 : vector<16x1xf32>
    %cst_38 = arith.constant 2.000000e+00 : f32
    %100 = vector.broadcast %cst_38 : f32 to vector<16x1xf32>
    %101 = arith.subf %100, %99 : vector<16x1xf32>
    %102 = arith.mulf %98, %101 : vector<16x1xf32>
    %103 = vector.broadcast %102 : vector<16x1xf32> to vector<16x16xf32>
    %104 = arith.mulf %95, %103 : vector<16x16xf32>
    %cst_39 = arith.constant dense<0.000000e+00> : vector<16x8xf32>
    %105 = tpu.matmul %104, %88, %cst_39 {dimension_numbers = #tpu.dot_dimension_numbers<[1], [0], [0], [1], [0, 0, 1, 1], [], []>} : vector<16x16xf32>, vector<16x8xf32>, vector<16x8xf32> -> vector<16x8xf32>
    %c0_40 = arith.constant 0 : index
    %c16 = arith.constant 16 : index
    %106 = vector.load %arg4[%c0_40, %c16] : memref<16x32xf32, #tpu.memory_space<vmem>>, vector<16x8xf32>
    tpu.vector_store %arg4[%c0_40, %c16], %105 {strides = array<i32>} : memref<16x32xf32, #tpu.memory_space<vmem>>, vector<16x8xf32>,
    %107 = vector.extract_strided_slice %43 {offsets = [0, 24], sizes = [16, 8], strides = [1, 1]} : vector<16x96xf32> to vector<16x8xf32>
    %108 = vector.extract_strided_slice %43 {offsets = [0, 56], sizes = [16, 8], strides = [1, 1]} : vector<16x96xf32> to vector<16x8xf32>
    %109 = vector.extract_strided_slice %43 {offsets = [0, 88], sizes = [16, 8], strides = [1, 1]} : vector<16x96xf32> to vector<16x8xf32>
    %cst_41 = arith.constant dense<0.000000e+00> : vector<16x16xf32>
    %110 = tpu.matmul %107, %108, %cst_41 {dimension_numbers = #tpu.dot_dimension_numbers<[1], [1], [0], [0], [0, 0, 1, 0], [], []>} : vector<16x8xf32>, vector<16x8xf32>, vector<16x16xf32> -> vector<16x16xf32>
    %111 = arith.addf %110, %1 : vector<16x16xf32>
    %cst_42 = arith.constant dense<0xFF800000> : vector<16xf32>
    %112 = vector.multi_reduction <maximumf>, %111, %cst_42 [1] : vector<16x16xf32> to vector<16xf32>
    %113 = vector.shape_cast %112 : vector<16xf32> to vector<16x1xf32>
    %114 = vector.broadcast %113 : vector<16x1xf32> to vector<16x16xf32>
    %115 = arith.subf %111, %114 : vector<16x16xf32>
    %116 = math.exp %115 : vector<16x16xf32>
    %cst_43 = arith.constant dense<0.000000e+00> : vector<16xf32>
    %117 = vector.multi_reduction <add>, %116, %cst_43 [1] : vector<16x16xf32> to vector<16xf32>
    %118 = vector.shape_cast %117 : vector<16xf32> to vector<16x1xf32>
    %119 = tpu.reciprocal %118 {approx = true} : vector<16x1xf32> -> vector<16x1xf32>
    %120 = arith.mulf %118, %119 : vector<16x1xf32>
    %cst_44 = arith.constant 2.000000e+00 : f32
    %121 = vector.broadcast %cst_44 : f32 to vector<16x1xf32>
    %122 = arith.subf %121, %120 : vector<16x1xf32>
    %123 = arith.mulf %119, %122 : vector<16x1xf32>
    %124 = vector.broadcast %123 : vector<16x1xf32> to vector<16x16xf32>
    %125 = arith.mulf %116, %124 : vector<16x16xf32>
    %cst_45 = arith.constant dense<0.000000e+00> : vector<16x8xf32>
    %126 = tpu.matmul %125, %109, %cst_45 {dimension_numbers = #tpu.dot_dimension_numbers<[1], [0], [0], [1], [0, 0, 1, 1], [], []>} : vector<16x16xf32>, vector<16x8xf32>, vector<16x8xf32> -> vector<16x8xf32>
    %c0_46 = arith.constant 0 : index
    %c24 = arith.constant 24 : index
    %127 = vector.load %arg4[%c0_46, %c24] : memref<16x32xf32, #tpu.memory_space<vmem>>, vector<16x8xf32>
    tpu.vector_store %arg4[%c0_46, %c24], %126 {strides = array<i32>} : memref<16x32xf32, #tpu.memory_space<vmem>>, vector<16x8xf32>,
    %c0_47 = arith.constant 0 : index
    %c0_48 = arith.constant 0 : index
    %128 = vector.load %arg4[%c0_47, %c0_48] : memref<16x32xf32, #tpu.memory_space<vmem>>, vector<16x32xf32>
    %cst_49 = arith.constant dense<0.000000e+00> : vector<16x32xf32>
    %129 = tpu.matmul %128, %8, %cst_49 {dimension_numbers = #tpu.dot_dimension_numbers<[1], [0], [0], [1], [0, 0, 1, 1], [], []>} : vector<16x32xf32>, vector<32x32xf32>, vector<16x32xf32> -> vector<16x32xf32>
    %130 = vector.broadcast %9 : vector<1x32xf32> to vector<16x32xf32>
    %131 = arith.addf %129, %130 : vector<16x32xf32>
    %132 = arith.addf %0, %131 : vector<16x32xf32>
    %cst_50 = arith.constant dense<0.000000e+00> : vector<16xf32>
    %133 = vector.multi_reduction <add>, %132, %cst_50 [1] : vector<16x32xf32> to vector<16xf32>
    %134 = vector.shape_cast %133 : vector<16xf32> to vector<16x1xf32>
    %cst_51 = arith.constant 3.200000e+01 : f32
    %135 = vector.broadcast %cst_51 : f32 to vector<16x1xf32>
    %136 = arith.divf %134, %135 : vector<16x1xf32>
    %137 = vector.broadcast %136 : vector<16x1xf32> to vector<16x32xf32>
    %138 = arith.subf %132, %137 : vector<16x32xf32>
    %139 = arith.mulf %138, %138 : vector<16x32xf32>
    %cst_52 = arith.constant dense<0.000000e+00> : vector<16xf32>
    %140 = vector.multi_reduction <add>, %139, %cst_52 [1] : vector<16x32xf32> to vector<16xf32>
    %141 = vector.shape_cast %140 : vector<16xf32> to vector<16x1xf32>
    %cst_53 = arith.constant 3.100000e+01 : f32
    %142 = vector.broadcast %cst_53 : f32 to vector<16x1xf32>
    %143 = arith.divf %141, %142 : vector<16x1xf32>
    %144 = math.sqrt %143 : vector<16x1xf32>
    %145 = vector.broadcast %136 : vector<16x1xf32> to vector<16x32xf32>
    %146 = arith.subf %132, %145 : vector<16x32xf32>
    %147 = vector.broadcast %4 : vector<1x32xf32> to vector<16x32xf32>
    %148 = arith.mulf %147, %146 : vector<16x32xf32>
    %cst_54 = arith.constant 9.99999997E-7 : f32
    %149 = vector.broadcast %cst_54 : f32 to vector<16x1xf32>
    %150 = arith.addf %144, %149 : vector<16x1xf32>
    %151 = tpu.reciprocal %150 {approx = true} : vector<16x1xf32> -> vector<16x1xf32>
    %152 = arith.mulf %150, %151 : vector<16x1xf32>
    %cst_55 = arith.constant 2.000000e+00 : f32
    %153 = vector.broadcast %cst_55 : f32 to vector<16x1xf32>
    %154 = arith.subf %153, %152 : vector<16x1xf32>
    %155 = arith.mulf %151, %154 : vector<16x1xf32>
    %156 = vector.broadcast %155 : vector<16x1xf32> to vector<16x32xf32>
    %157 = arith.mulf %148, %156 : vector<16x32xf32>
    %158 = vector.broadcast %5 : vector<1x32xf32> to vector<16x32xf32>
    %159 = arith.addf %157, %158 : vector<16x32xf32>
    %cst_56 = arith.constant dense<0.000000e+00> : vector<16x64xf32>
    %160 = tpu.matmul %159, %10, %cst_56 {dimension_numbers = #tpu.dot_dimension_numbers<[1], [0], [0], [1], [0, 0, 1, 1], [], []>} : vector<16x32xf32>, vector<32x64xf32>, vector<16x64xf32> -> vector<16x64xf32>
    %161 = vector.broadcast %11 : vector<1x64xf32> to vector<16x64xf32>
    %162 = arith.addf %160, %161 : vector<16x64xf32>
    %cst_57 = arith.constant 0.000000e+00 : f32
    %163 = vector.broadcast %cst_57 : f32 to vector<16x64xf32>
    %164 = arith.maximumf %162, %163 : vector<16x64xf32>
    %cst_58 = arith.constant dense<0.000000e+00> : vector<16x32xf32>
    %165 = tpu.matmul %164, %12, %cst_58 {dimension_numbers = #tpu.dot_dimension_numbers<[1], [0], [0], [1], [0, 0, 1, 1], [], []>} : vector<16x64xf32>, vector<64x32xf32>, vector<16x32xf32> -> vector<16x32xf32>
    %166 = vector.broadcast %13 : vector<1x32xf32> to vector<16x32xf32>
    %167 = arith.addf %165, %166 : vector<16x32xf32>
    %168 = arith.addf %132, %167 : vector<16x32xf32>
    %c0_59 = arith.constant 0 : index
    %c0_60 = arith.constant 0 : index
    %169 = vector.load %arg3[%c0_59, %c0_60] : memref<16x32xf32, #tpu.memory_space<vmem>>, vector<16x32xf32>
    tpu.vector_store %arg3[%c0_59, %c0_60], %168 {strides = array<i32>} : memref<16x32xf32, #tpu.memory_space<vmem>>, vector<16x32xf32>,
    return
  }
}

</mosaic_0001>

<llo_original>
// kernel: tpu_custom_call.1
$region0: #{tpu_custom_call.1}
  #allocation0 [shape = 'u32[]', space=smem, size = 0x4, offset = 0x4, fixed_abs, tag = 'smem constant byte address 0x4 - core index']
  #allocation1 [shape = 'u32[72,128]{1,0:T(1,128)}', space=vmem, size = 0x9000, scoped, tag = 'internal scratch']
  #allocation2 [shape = 'f32[16,32]{1,0:T(8,128)}', space=vmem, size = 0x2000, scoped, tag = 'scratch operand']
  %s0 = inlined_call_operand.hbm [shape: f32[16,32], index: 0, kind: input, shape index: {}]
  %s1 = inlined_call_operand.hbm [shape: f32[16,16], index: 1, kind: input, shape index: {}]
  %s2 = inlined_call_operand.hbm [shape: f32[168,128], index: 2, kind: input, shape index: {}]
  %s3 = inlined_call_operand.hbm [shape: f32[16,32], index: 3, kind: output, shape index: {}]
  %s4 = sld [smem:[#allocation0]]
  $region34: #{tpu_custom_call.1} parent=0
    _
  %s6 = ssub.s32 1, %s4
  %s7 = scalar_select 0, %s6, %s4
  $region1: #{tpu_custom_call.1} parent=0
    #allocation3 [shape = 'u8[8192]{0}', space=vmem, size = 0x2000, scoped, tag = 'input window, operand 0, single buffered']
    #allocation4 [shape = 's32[1]{0}', space=sflag, size = 0x4, scoped, tag = 'scoped memory for tpu_custom_call.1']
    #allocation5 [shape = 's32[1]{0}', space=sflag, size = 0x4, scoped, tag = 'scoped memory for tpu_custom_call.1']
    #allocation6 [shape = 'u8[8192]{0}', space=vmem, size = 0x2000, scoped, tag = 'input window, operand 1, single buffered']
    #allocation7 [shape = 's32[1]{0}', space=sflag, size = 0x4, scoped, tag = 'scoped memory for tpu_custom_call.1']
    #allocation8 [shape = 'u8[86016]{0}', space=vmem, size = 0x15000, scoped, tag = 'input window, operand 2, single buffered']
    #allocation9 [shape = 'u8[8192]{0}', space=vmem, size = 0x2000, scoped, tag = 'output window, operand 0, single buffered']
    %8 = vsyncpa [#allocation4], 0
    %9 = vsyncpa [#allocation7], 0
    %10 = vsyncpa [#allocation5], 0
    // Predicated region
    $region2: #{tpu_custom_call.1} parent=1 // pred_check
      _
    $region3: #{tpu_custom_call.1} parent=1 // pred_check_branch
      %12 = sbr.rel (0) target = $region5
    $region4: #{tpu_custom_call.1} parent=1 // pred_region
      %14 = vsyncadd [#allocation4], 0
      %s15 = sshll.u32 %s0, 4
      %s16 = int_to_ptr.hbm [resolvable:$true] %s15
      %s17 = sshll.u32 [#allocation3], 4
      %s18 = int_to_ptr.vmem [resolvable:$true] %s17
      %23 = dma.hbm_to_vmem [thread:$0]  %s16, 256, %s18, [#allocation4], 128, 128, 8
    $region5: #{tpu_custom_call.1} parent=1 // pred_fallthru
      _
    // Predicated region
    $region6: #{tpu_custom_call.1} parent=1 // pred_check
      _
    $region7: #{tpu_custom_call.1} parent=1 // pred_check_branch
      %25 = sbr.rel (0) target = $region9
    $region8: #{tpu_custom_call.1} parent=1 // pred_region
      %27 = vsyncadd [#allocation7], 0
      %s28 = sshll.u32 %s1, 4
      %s29 = int_to_ptr.hbm [resolvable:$true] %s28
      %s30 = sshll.u32 [#allocation6], 4
      %s31 = int_to_ptr.vmem [resolvable:$true] %s30
      %36 = dma.hbm_to_vmem [thread:$0]  %s29, 256, %s31, [#allocation7], 128, 128, 8
    $region9: #{tpu_custom_call.1} parent=1 // pred_fallthru
      _
    // Predicated region
    $region10: #{tpu_custom_call.1} parent=1 // pred_check
      _
    $region11: #{tpu_custom_call.1} parent=1 // pred_check_branch
      %38 = sbr.rel (0) target = $region13
    $region12: #{tpu_custom_call.1} parent=1 // pred_region
      %40 = vsyncadd [#allocation7], 0
      %s41 = sshll.u32 %s2, 4
      %s42 = int_to_ptr.hbm [resolvable:$true] %s41
      %s43 = sshll.u32 [#allocation8], 4
      %s44 = int_to_ptr.vmem [resolvable:$true] %s43
      %49 = dma.hbm_to_vmem [thread:$0]  %s42, 2688, %s44, [#allocation7], 128, 128, 8
    $region13: #{tpu_custom_call.1} parent=1 // pred_fallthru
      _
    // Predicated region
    $region14: #{tpu_custom_call.1} parent=1 // pred_check
      _
    $region15: #{tpu_custom_call.1} parent=1 // pred_check_branch
      %51 = sbr.rel (0) target = $region17
    $region16: #{tpu_custom_call.1} parent=1 // pred_region
      %53 = dma.done [#allocation4], 256
    $region17: #{tpu_custom_call.1} parent=1 // pred_fallthru
      _
    // Predicated region
    $region18: #{tpu_custom_call.1} parent=1 // pred_check
      _
    $region19: #{tpu_custom_call.1} parent=1 // pred_check_branch
      %55 = sbr.rel (0) target = $region21
    $region20: #{tpu_custom_call.1} parent=1 // pred_region
      %57 = dma.done [#allocation7], 256
    $region21: #{tpu_custom_call.1} parent=1 // pred_fallthru
      _
    // Predicated region
    $region22: #{tpu_custom_call.1} parent=1 // pred_check
      _
    $region23: #{tpu_custom_call.1} parent=1 // pred_check_branch
      %59 = sbr.rel (0) target = $region25
    $region24: #{tpu_custom_call.1} parent=1 // pred_region
      %61 = dma.done [#allocation7], 2688
    $region25: #{tpu_custom_call.1} parent=1 // pred_fallthru
      _
    %v62 = vld [vmem:[#allocation3] sm:$0xff]
    %v63 = vld [vmem:[#allocation3 + $0x8] sm:$0xff]
    %v64 = vld [vmem:[#allocation6] sm:$0xff]
    %v65 = vld [vmem:[#allocation6 + $0x8] sm:$0xff]
    %v66 = vld [vmem:[#allocation8 + $0xa0] sm:$0x1]
    %v67 = vld [vmem:[#allocation8 + $0xa1] sm:$0x1]
    %v68 = vld [vmem:[#allocation8 + $0xa2] sm:$0x1]
    %v69 = vld [vmem:[#allocation8 + $0xa3] sm:$0x1]
    %v70 = vld [vmem:[#allocation8] sm:$0xff]
    %v71 = vld [vmem:[#allocation8 + $0x8] sm:$0xff]
    %v72 = vld [vmem:[#allocation8 + $0x10] sm:$0xff]
    %v73 = vld [vmem:[#allocation8 + $0x18] sm:$0xff]
    %v74 = vld [vmem:[#allocation8 + $0xa4] sm:$0x1]
    %v75 = vld [vmem:[#allocation8 + $0x20] sm:$0xff]
    %v76 = vld [vmem:[#allocation8 + $0x28] sm:$0xff]
    %v77 = vld [vmem:[#allocation8 + $0x30] sm:$0xff]
    %v78 = vld [vmem:[#allocation8 + $0x38] sm:$0xff]
    %v79 = vld [vmem:[#allocation8 + $0xa5] sm:$0x1]
    %v80 = vld [vmem:[#allocation8 + $0x40] sm:$0xff]
    %v81 = vld [vmem:[#allocation8 + $0x48] sm:$0xff]
    %v82 = vld [vmem:[#allocation8 + $0x50] sm:$0xff]
    %v83 = vld [vmem:[#allocation8 + $0x58] sm:$0xff]
    %v84 = vld [vmem:[#allocation8 + $0xa6] sm:$0x1]
    %v85 = vld [vmem:[#allocation8 + $0x60] sm:$0xff]
    %v86 = vld [vmem:[#allocation8 + $0x68] sm:$0xff]
    %v87 = vld [vmem:[#allocation8 + $0x70] sm:$0xff]
    %v88 = vld [vmem:[#allocation8 + $0x78] sm:$0xff]
    %v89 = vld [vmem:[#allocation8 + $0x80] sm:$0xff]
    %v90 = vld [vmem:[#allocation8 + $0x88] sm:$0xff]
    %v91 = vld [vmem:[#allocation8 + $0x90] sm:$0xff]
    %v92 = vld [vmem:[#allocation8 + $0x98] sm:$0xff]
    %v93 = vld [vmem:[#allocation8 + $0xa7] sm:$0x1]
    %vm94 = vcmask 261120
    %v95 = vsel %vm94, %v62, 0.0
    %96 = vadd.xlane.f32.xlu0 %v95
    %v97 = vpop.xlane.xlu0 %96
    %v98 = vsel %vm94, %v63, 0.0
    %99 = vadd.xlane.f32.xlu0 %v98
    %v100 = vpop.xlane.xlu0 %99
    %v101 = vrcp.pop 32.0
    %v102 = vmul.f32 32.0, %v101
    %v103 = vsub.f32 1.0, %v102
    %v104 = vmul.f32 %v101, %v103
    %v105 = vadd.f32 %v101, %v104
    %vm106 = vweird.f32 %v101
    %v107 = vsel %vm106, %v101, %v105
    %v108 = vmul.f32 %v97, %v107
    %v109 = vmul.f32 %v100, %v107
    %v110 = vsub.f32 %v62, %v108
    %v111 = vsub.f32 %v63, %v109
    %v112 = vmul.f32 %v110, %v110
    %v113 = vmul.f32 %v111, %v111
    %v114 = vsel %vm94, %v112, 0.0
    %115 = vadd.xlane.f32.xlu0 %v114
    %v116 = vpop.xlane.xlu0 %115
    %v117 = vsel %vm94, %v113, 0.0
    %118 = vadd.xlane.f32.xlu0 %v117
    %v119 = vpop.xlane.xlu0 %118
    %v120 = vrcp.pop 31.0
    %v121 = vmul.f32 31.0, %v120
    %v122 = vsub.f32 1.0, %v121
    %v123 = vmul.f32 %v120, %v122
    %v124 = vadd.f32 %v120, %v123
    %vm125 = vweird.f32 %v120
    %v126 = vsel %vm125, %v120, %v124
    %v127 = vmul.f32 %v116, %v126
    %v128 = vmul.f32 %v119, %v126
    %v129 = vrsqrt.pop %v127
    %v130 = vmul.f32 %v129, %v127
    %v131 = vmul.f32 %v130, %v129
    %v132 = vmul.f32 0.5, %v131
    %v133 = vsub.f32 1.5, %v132
    %v134 = vmul.f32 %v129, %v133
    %v135 = vmul.f32 %v127, %v134
    %vm136 = vcmp.eq.f32.partialorder %v127, inf
    %v137 = vsel %vm136, %v127, %v135
    %vm138 = vcmp.eq.f32.partialorder %v127, 0.0
    %v139 = vand.u32 %v127, 2147483648
    %v140 = vsel %vm138, %v139, %v137
    %v141 = vrsqrt.pop %v128
    %v142 = vmul.f32 %v141, %v128
    %v143 = vmul.f32 %v142, %v141
    %v144 = vmul.f32 0.5, %v143
    %v145 = vsub.f32 1.5, %v144
    %v146 = vmul.f32 %v141, %v145
    %v147 = vmul.f32 %v128, %v146
    %vm148 = vcmp.eq.f32.partialorder %v128, inf
    %v149 = vsel %vm148, %v128, %v147
    %vm150 = vcmp.eq.f32.partialorder %v128, 0.0
    %v151 = vand.u32 %v128, 2147483648
    %v152 = vsel %vm150, %v151, %v149
    %v153 = vperm.slane %v66, 0
    %v154 = vmul.f32 %v153, %v110
    %v155 = vmul.f32 %v153, %v111
    %v156 = vadd.f32 %v140, 1e-06
    %v157 = vadd.f32 %v152, 1e-06
    %v158 = vrcp.pop %v156
    %v159 = vrcp.pop %v157
    %v160 = vmul.f32 %v156, %v158
    %v161 = vmul.f32 %v157, %v159
    %v162 = vsub.f32 2.0, %v160
    %v163 = vsub.f32 2.0, %v161
    %v164 = vmul.f32 %v158, %v162
    %v165 = vmul.f32 %v159, %v163
    %v166 = vmul.f32 %v154, %v164
    %v167 = vmul.f32 %v155, %v165
    %v168 = vperm.slane %v67, 0
    %v169 = vadd.f32 %v166, %v168
    %v170 = vadd.f32 %v167, %v168
    %v171 = vperm.slane %v74, 0
    %v173 = vsel %vm94, %v169, 0
    %v176 = vsel %vm94, %v170, 0
    %178 = vmatpush.msra.mxu0 0.0
    %179 = vmatpush.msra.mxu0 0.0
    %180 = vmatpush.msra.mxu0 0.0
    %181 = vmatpush.msra.mxu0 0.0
    %182 = vmatpush.msra.mxu0 0.0
    %183 = vmatpush.msra.mxu0 0.0
    %184 = vmatpush.msra.mxu0 0.0
    %185 = vmatpush.msra.mxu0 0.0
    %186 = vmatpush.msra.mxu0 0.0
    %187 = vmatpush.msra.mxu0 0.0
    %188 = vmatpush.msra.mxu0 0.0
    %189 = vmatpush.msra.mxu0 0.0
    %190 = vmatpush.msra.mxu0 %v73
    %191 = vmatpush.msra.mxu0 %v72
    %192 = vmatpush.msra.mxu0 %v71
    %193 = vmatpush.msra.mxu0 %v70
    %194 = vmatmul.f32.gmra.mxu0 %v173
    %v195 = vpop.f32.mrf.mxu0
    %v196 = vadd.f32 %v171, %v195
    %197 = vmatmul.f32.gmra.mxu0 %v176
    %v198 = vpop.f32.mrf.mxu0
    %v199 = vadd.f32 %v171, %v198
    %200 = vdwg.mxu0
    %203 = vrot.lane.b32.xlu0 %v196, 96
    %v204 = vpop.permute.xlu0 %203
    %205 = vrot.lane.b32.xlu0 %v199, 96
    %v206 = vpop.permute.xlu0 %205
    %vm207 = vcmask 64512
    %v208 = vsel %vm207, %v196, 0
    %v210 = vsel %vm207, %v199, 0
    %v212 = vsel %vm207, %v204, 0
    %v214 = vsel %vm207, %v206, 0
    %216 = vmatpush.xpose.msra.mxu0 0.0
    %217 = vmatpush.xpose.msra.mxu0 0.0
    %218 = vmatpush.xpose.msra.mxu0 0.0
    %219 = vmatpush.xpose.msra.mxu0 0.0
    %220 = vmatpush.xpose.msra.mxu0 0.0
    %221 = vmatpush.xpose.msra.mxu0 0.0
    %222 = vmatpush.xpose.msra.mxu0 0.0
    %223 = vmatpush.xpose.msra.mxu0 0.0
    %224 = vmatpush.xpose.msra.mxu0 0.0
    %225 = vmatpush.xpose.msra.mxu0 0.0
    %226 = vmatpush.xpose.msra.mxu0 0.0
    %227 = vmatpush.xpose.msra.mxu0 0.0
    %228 = vmatpush.xpose.msra.mxu0 0.0
    %229 = vmatpush.xpose.msra.mxu0 0.0
    %230 = vmatpush.xpose.msra.mxu0 %v214
    %231 = vmatpush.xpose.msra.mxu0 %v212
    %232 = vmatmul.f32.gmra.mxu0 %v208
    %v233 = vpop.f32.mrf.mxu0
    %v234 = vadd.f32 %v64, %v233
    %235 = vmatmul.f32.gmra.mxu0 %v210
    %v236 = vpop.f32.mrf.mxu0
    %v237 = vadd.f32 %v65, %v236
    %238 = vdwg.mxu0
    %vm239 = vcmask 130048
    %v240 = vsel %vm239, %v234, -inf
    %241 = vmax.xlane.f32.xlu0 %v240
    %v242 = vpop.xlane.xlu0 %241
    %v243 = vsel %vm239, %v237, -inf
    %244 = vmax.xlane.f32.xlu0 %v243
    %v245 = vpop.xlane.xlu0 %244
    %v246 = vsub.f32 %v234, %v242
    %v247 = vsub.f32 %v237, %v245
    %v248 = vmul.f32 %v246, 1.442695
    %v249 = vpow.pop %v248
    %v250 = vmul.f32 %v247, 1.442695
    %v251 = vpow.pop %v250
    %v252 = vsel %vm239, %v249, 0.0
    %253 = vadd.xlane.f32.xlu0 %v252
    %v254 = vpop.xlane.xlu0 %253
    %v255 = vsel %vm239, %v251, 0.0
    %256 = vadd.xlane.f32.xlu0 %v255
    %v257 = vpop.xlane.xlu0 %256
    %v258 = vrcp.pop %v254
    %v259 = vrcp.pop %v257
    %v260 = vmul.f32 %v254, %v258
    %v261 = vmul.f32 %v257, %v259
    %v262 = vsub.f32 2.0, %v260
    %v263 = vsub.f32 2.0, %v261
    %v264 = vmul.f32 %v258, %v262
    %v265 = vmul.f32 %v259, %v263
    %v266 = vmul.f32 %v249, %v264
    %v267 = vmul.f32 %v251, %v265
    %268 = vrot.lane.b32.xlu0 %v196, 64
    %v269 = vpop.permute.xlu0 %268
    %270 = vrot.lane.b32.xlu0 %v199, 64
    %v271 = vpop.permute.xlu0 %270
    %v275 = vsel %vm239, %v266, 0
    %v278 = vsel %vm239, %v267, 0
    %280 = vmatpush.msra.mxu0 0.0
    %281 = vmatpush.msra.mxu0 0.0
    %282 = vmatpush.msra.mxu0 0.0
    %283 = vmatpush.msra.mxu0 0.0
    %284 = vmatpush.msra.mxu0 0.0
    %285 = vmatpush.msra.mxu0 0.0
    %286 = vmatpush.msra.mxu0 0.0
    %287 = vmatpush.msra.mxu0 0.0
    %288 = vmatpush.msra.mxu0 0.0
    %289 = vmatpush.msra.mxu0 0.0
    %290 = vmatpush.msra.mxu0 0.0
    %291 = vmatpush.msra.mxu0 0.0
    %292 = vmatpush.msra.mxu0 0.0
    %293 = vmatpush.msra.mxu0 0.0
    %294 = vmatpush.msra.mxu0 %v271
    %295 = vmatpush.msra.mxu0 %v269
    %296 = vmatmul.f32.gmra.mxu0 %v275
    %v297 = vpop.f32.mrf.mxu0
    %v298 = vadd.f32 0.0, %v297
    %299 = vmatmul.f32.gmra.mxu0 %v278
    %v300 = vpop.f32.mrf.mxu0
    %v301 = vadd.f32 0.0, %v300
    %302 = vdwg.mxu0
    %303 = vst.msk [vmem:[#allocation2] sm:$0xff] %vm207, %v298
    %304 = vst.msk [vmem:[#allocation2 + $0x8] sm:$0xff] %vm207, %v301
    %305 = vrot.lane.b32.xlu0 %v196, 120
    %v306 = vpop.permute.xlu0 %305
    %307 = vrot.lane.b32.xlu0 %v199, 120
    %v308 = vpop.permute.xlu0 %307
    %309 = vrot.lane.b32.xlu0 %v196, 88
    %v310 = vpop.permute.xlu0 %309
    %311 = vrot.lane.b32.xlu0 %v199, 88
    %v312 = vpop.permute.xlu0 %311
    %v313 = vsel %vm207, %v306, 0
    %v315 = vsel %vm207, %v308, 0
    %v317 = vsel %vm207, %v310, 0
    %v319 = vsel %vm207, %v312, 0
    %321 = vmatpush.xpose.msra.mxu0 0.0
    %322 = vmatpush.xpose.msra.mxu0 0.0
    %323 = vmatpush.xpose.msra.mxu0 0.0
    %324 = vmatpush.xpose.msra.mxu0 0.0
    %325 = vmatpush.xpose.msra.mxu0 0.0
    %326 = vmatpush.xpose.msra.mxu0 0.0
    %327 = vmatpush.xpose.msra.mxu0 0.0
    %328 = vmatpush.xpose.msra.mxu0 0.0
    %329 = vmatpush.xpose.msra.mxu0 0.0
    %330 = vmatpush.xpose.msra.mxu0 0.0
    %331 = vmatpush.xpose.msra.mxu0 0.0
    %332 = vmatpush.xpose.msra.mxu0 0.0
    %333 = vmatpush.xpose.msra.mxu0 0.0
    %334 = vmatpush.xpose.msra.mxu0 0.0
    %335 = vmatpush.xpose.msra.mxu0 %v319
    %336 = vmatpush.xpose.msra.mxu0 %v317
    %337 = vmatmul.f32.gmra.mxu0 %v313
    %v338 = vpop.f32.mrf.mxu0
    %v339 = vadd.f32 %v64, %v338
    %340 = vmatmul.f32.gmra.mxu0 %v315
    %v341 = vpop.f32.mrf.mxu0
    %v342 = vadd.f32 %v65, %v341
    %343 = vdwg.mxu0
    %v344 = vsel %vm239, %v339, -inf
    %345 = vmax.xlane.f32.xlu0 %v344
    %v346 = vpop.xlane.xlu0 %345
    %v347 = vsel %vm239, %v342, -inf
    %348 = vmax.xlane.f32.xlu0 %v347
    %v349 = vpop.xlane.xlu0 %348
    %v350 = vsub.f32 %v339, %v346
    %v351 = vsub.f32 %v342, %v349
    %v352 = vmul.f32 %v350, 1.442695
    %v353 = vpow.pop %v352
    %v354 = vmul.f32 %v351, 1.442695
    %v355 = vpow.pop %v354
    %v356 = vsel %vm239, %v353, 0.0
    %357 = vadd.xlane.f32.xlu0 %v356
    %v358 = vpop.xlane.xlu0 %357
    %v359 = vsel %vm239, %v355, 0.0
    %360 = vadd.xlane.f32.xlu0 %v359
    %v361 = vpop.xlane.xlu0 %360
    %v362 = vrcp.pop %v358
    %v363 = vrcp.pop %v361
    %v364 = vmul.f32 %v358, %v362
    %v365 = vmul.f32 %v361, %v363
    %v366 = vsub.f32 2.0, %v364
    %v367 = vsub.f32 2.0, %v365
    %v368 = vmul.f32 %v362, %v366
    %v369 = vmul.f32 %v363, %v367
    %v370 = vmul.f32 %v353, %v368
    %v371 = vmul.f32 %v355, %v369
    %372 = vrot.lane.b32.xlu0 %v196, 56
    %v373 = vpop.permute.xlu0 %372
    %374 = vrot.lane.b32.xlu0 %v199, 56
    %v375 = vpop.permute.xlu0 %374
    %v379 = vsel %vm239, %v370, 0
    %v382 = vsel %vm239, %v371, 0
    %384 = vmatpush.msra.mxu0 0.0
    %385 = vmatpush.msra.mxu0 0.0
    %386 = vmatpush.msra.mxu0 0.0
    %387 = vmatpush.msra.mxu0 0.0
    %388 = vmatpush.msra.mxu0 0.0
    %389 = vmatpush.msra.mxu0 0.0
    %390 = vmatpush.msra.mxu0 0.0
    %391 = vmatpush.msra.mxu0 0.0
    %392 = vmatpush.msra.mxu0 0.0
    %393 = vmatpush.msra.mxu0 0.0
    %394 = vmatpush.msra.mxu0 0.0
    %395 = vmatpush.msra.mxu0 0.0
    %396 = vmatpush.msra.mxu0 0.0
    %397 = vmatpush.msra.mxu0 0.0
    %398 = vmatpush.msra.mxu0 %v375
    %399 = vmatpush.msra.mxu0 %v373
    %400 = vmatmul.f32.gmra.mxu0 %v379
    %v401 = vpop.f32.mrf.mxu0
    %v402 = vadd.f32 0.0, %v401
    %403 = vmatmul.f32.gmra.mxu0 %v382
    %v404 = vpop.f32.mrf.mxu0
    %v405 = vadd.f32 0.0, %v404
    %406 = vdwg.mxu0
    %409 = vrot.lane.b32.xlu0 %v402, 8
    %v410 = vpop.permute.xlu0 %409
    %411 = vrot.lane.b32.xlu0 %v405, 8
    %v412 = vpop.permute.xlu0 %411
    %vm415 = vcmask 130112
    %416 = vst.msk [vmem:[#allocation2] sm:$0xff] %vm415, %v410
    %417 = vst.msk [vmem:[#allocation2 + $0x8] sm:$0xff] %vm415, %v412
    %418 = vrot.lane.b32.xlu0 %v196, 112
    %v419 = vpop.permute.xlu0 %418
    %420 = vrot.lane.b32.xlu0 %v199, 112
    %v421 = vpop.permute.xlu0 %420
    %422 = vrot.lane.b32.xlu0 %v196, 80
    %v423 = vpop.permute.xlu0 %422
    %424 = vrot.lane.b32.xlu0 %v199, 80
    %v425 = vpop.permute.xlu0 %424
    %v426 = vsel %vm207, %v419, 0
    %v428 = vsel %vm207, %v421, 0
    %v430 = vsel %vm207, %v423, 0
    %v432 = vsel %vm207, %v425, 0
    %434 = vmatpush.xpose.msra.mxu0 0.0
    %435 = vmatpush.xpose.msra.mxu0 0.0
    %436 = vmatpush.xpose.msra.mxu0 0.0
    %437 = vmatpush.xpose.msra.mxu0 0.0
    %438 = vmatpush.xpose.msra.mxu0 0.0
    %439 = vmatpush.xpose.msra.mxu0 0.0
    %440 = vmatpush.xpose.msra.mxu0 0.0
    %441 = vmatpush.xpose.msra.mxu0 0.0
    %442 = vmatpush.xpose.msra.mxu0 0.0
    %443 = vmatpush.xpose.msra.mxu0 0.0
    %444 = vmatpush.xpose.msra.mxu0 0.0
    %445 = vmatpush.xpose.msra.mxu0 0.0
    %446 = vmatpush.xpose.msra.mxu0 0.0
    %447 = vmatpush.xpose.msra.mxu0 0.0
    %448 = vmatpush.xpose.msra.mxu0 %v432
    %449 = vmatpush.xpose.msra.mxu0 %v430
    %450 = vmatmul.f32.gmra.mxu0 %v426
    %v451 = vpop.f32.mrf.mxu0
    %v452 = vadd.f32 %v64, %v451
    %453 = vmatmul.f32.gmra.mxu0 %v428
    %v454 = vpop.f32.mrf.mxu0
    %v455 = vadd.f32 %v65, %v454
    %456 = vdwg.mxu0
    %v457 = vsel %vm239, %v452, -inf
    %458 = vmax.xlane.f32.xlu0 %v457
    %v459 = vpop.xlane.xlu0 %458
    %v460 = vsel %vm239, %v455, -inf
    %461 = vmax.xlane.f32.xlu0 %v460
    %v462 = vpop.xlane.xlu0 %461
    %v463 = vsub.f32 %v452, %v459
    %v464 = vsub.f32 %v455, %v462
    %v465 = vmul.f32 %v463, 1.442695
    %v466 = vpow.pop %v465
    %v467 = vmul.f32 %v464, 1.442695
    %v468 = vpow.pop %v467
    %v469 = vsel %vm239, %v466, 0.0
    %470 = vadd.xlane.f32.xlu0 %v469
    %v471 = vpop.xlane.xlu0 %470
    %v472 = vsel %vm239, %v468, 0.0
    %473 = vadd.xlane.f32.xlu0 %v472
    %v474 = vpop.xlane.xlu0 %473
    %v475 = vrcp.pop %v471
    %v476 = vrcp.pop %v474
    %v477 = vmul.f32 %v471, %v475
    %v478 = vmul.f32 %v474, %v476
    %v479 = vsub.f32 2.0, %v477
    %v480 = vsub.f32 2.0, %v478
    %v481 = vmul.f32 %v475, %v479
    %v482 = vmul.f32 %v476, %v480
    %v483 = vmul.f32 %v466, %v481
    %v484 = vmul.f32 %v468, %v482
    %485 = vrot.lane.b32.xlu0 %v196, 48
    %v486 = vpop.permute.xlu0 %485
    %487 = vrot.lane.b32.xlu0 %v199, 48
    %v488 = vpop.permute.xlu0 %487
    %v492 = vsel %vm239, %v483, 0
    %v495 = vsel %vm239, %v484, 0
    %497 = vmatpush.msra.mxu0 0.0
    %498 = vmatpush.msra.mxu0 0.0
    %499 = vmatpush.msra.mxu0 0.0
    %500 = vmatpush.msra.mxu0 0.0
    %501 = vmatpush.msra.mxu0 0.0
    %502 = vmatpush.msra.mxu0 0.0
    %503 = vmatpush.msra.mxu0 0.0
    %504 = vmatpush.msra.mxu0 0.0
    %505 = vmatpush.msra.mxu0 0.0
    %506 = vmatpush.msra.mxu0 0.0
    %507 = vmatpush.msra.mxu0 0.0
    %508 = vmatpush.msra.mxu0 0.0
    %509 = vmatpush.msra.mxu0 0.0
    %510 = vmatpush.msra.mxu0 0.0
    %511 = vmatpush.msra.mxu0 %v488
    %512 = vmatpush.msra.mxu0 %v486
    %513 = vmatmul.f32.gmra.mxu0 %v492
    %v514 = vpop.f32.mrf.mxu0
    %v515 = vadd.f32 0.0, %v514
    %516 = vmatmul.f32.gmra.mxu0 %v495
    %v517 = vpop.f32.mrf.mxu0
    %v518 = vadd.f32 0.0, %v517
    %519 = vdwg.mxu0
    %522 = vrot.lane.b32.xlu0 %v515, 16
    %v523 = vpop.permute.xlu0 %522
    %524 = vrot.lane.b32.xlu0 %v518, 16
    %v525 = vpop.permute.xlu0 %524
    %vm528 = vcmask 195712
    %529 = vst.msk [vmem:[#allocation2] sm:$0xff] %vm528, %v523
    %530 = vst.msk [vmem:[#allocation2 + $0x8] sm:$0xff] %vm528, %v525
    %531 = vrot.lane.b32.xlu0 %v196, 104
    %v532 = vpop.permute.xlu0 %531
    %533 = vrot.lane.b32.xlu0 %v199, 104
    %v534 = vpop.permute.xlu0 %533
    %535 = vrot.lane.b32.xlu0 %v196, 72
    %v536 = vpop.permute.xlu0 %535
    %537 = vrot.lane.b32.xlu0 %v199, 72
    %v538 = vpop.permute.xlu0 %537
    %v539 = vsel %vm207, %v532, 0
    %v541 = vsel %vm207, %v534, 0
    %v543 = vsel %vm207, %v536, 0
    %v545 = vsel %vm207, %v538, 0
    %547 = vmatpush.xpose.msra.mxu0 0.0
    %548 = vmatpush.xpose.msra.mxu0 0.0
    %549 = vmatpush.xpose.msra.mxu0 0.0
    %550 = vmatpush.xpose.msra.mxu0 0.0
    %551 = vmatpush.xpose.msra.mxu0 0.0
    %552 = vmatpush.xpose.msra.mxu0 0.0
    %553 = vmatpush.xpose.msra.mxu0 0.0
    %554 = vmatpush.xpose.msra.mxu0 0.0
    %555 = vmatpush.xpose.msra.mxu0 0.0
    %556 = vmatpush.xpose.msra.mxu0 0.0
    %557 = vmatpush.xpose.msra.mxu0 0.0
    %558 = vmatpush.xpose.msra.mxu0 0.0
    %559 = vmatpush.xpose.msra.mxu0 0.0
    %560 = vmatpush.xpose.msra.mxu0 0.0
    %561 = vmatpush.xpose.msra.mxu0 %v545
    %562 = vmatpush.xpose.msra.mxu0 %v543
    %563 = vmatmul.f32.gmra.mxu0 %v539
    %v564 = vpop.f32.mrf.mxu0
    %v565 = vadd.f32 %v64, %v564
    %566 = vmatmul.f32.gmra.mxu0 %v541
    %v567 = vpop.f32.mrf.mxu0
    %v568 = vadd.f32 %v65, %v567
    %569 = vdwg.mxu0
    %v570 = vsel %vm239, %v565, -inf
    %571 = vmax.xlane.f32.xlu0 %v570
    %v572 = vpop.xlane.xlu0 %571
    %v573 = vsel %vm239, %v568, -inf
    %574 = vmax.xlane.f32.xlu0 %v573
    %v575 = vpop.xlane.xlu0 %574
    %v576 = vsub.f32 %v565, %v572
    %v577 = vsub.f32 %v568, %v575
    %v578 = vmul.f32 %v576, 1.442695
    %v579 = vpow.pop %v578
    %v580 = vmul.f32 %v577, 1.442695
    %v581 = vpow.pop %v580
    %v582 = vsel %vm239, %v579, 0.0
    %583 = vadd.xlane.f32.xlu0 %v582
    %v584 = vpop.xlane.xlu0 %583
    %v585 = vsel %vm239, %v581, 0.0
    %586 = vadd.xlane.f32.xlu0 %v585
    %v587 = vpop.xlane.xlu0 %586
    %v588 = vrcp.pop %v584
    %v589 = vrcp.pop %v587
    %v590 = vmul.f32 %v584, %v588
    %v591 = vmul.f32 %v587, %v589
    %v592 = vsub.f32 2.0, %v590
    %v593 = vsub.f32 2.0, %v591
    %v594 = vmul.f32 %v588, %v592
    %v595 = vmul.f32 %v589, %v593
    %v596 = vmul.f32 %v579, %v594
    %v597 = vmul.f32 %v581, %v595
    %598 = vrot.lane.b32.xlu0 %v196, 40
    %v599 = vpop.permute.xlu0 %598
    %600 = vrot.lane.b32.xlu0 %v199, 40
    %v601 = vpop.permute.xlu0 %600
    %v605 = vsel %vm239, %v596, 0
    %v608 = vsel %vm239, %v597, 0
    %610 = vmatpush.msra.mxu0 0.0
    %611 = vmatpush.msra.mxu0 0.0
    %612 = vmatpush.msra.mxu0 0.0
    %613 = vmatpush.msra.mxu0 0.0
    %614 = vmatpush.msra.mxu0 0.0
    %615 = vmatpush.msra.mxu0 0.0
    %616 = vmatpush.msra.mxu0 0.0
    %617 = vmatpush.msra.mxu0 0.0
    %618 = vmatpush.msra.mxu0 0.0
    %619 = vmatpush.msra.mxu0 0.0
    %620 = vmatpush.msra.mxu0 0.0
    %621 = vmatpush.msra.mxu0 0.0
    %622 = vmatpush.msra.mxu0 0.0
    %623 = vmatpush.msra.mxu0 0.0
    %624 = vmatpush.msra.mxu0 %v601
    %625 = vmatpush.msra.mxu0 %v599
    %626 = vmatmul.f32.gmra.mxu0 %v605
    %v627 = vpop.f32.mrf.mxu0
    %v628 = vadd.f32 0.0, %v627
    %629 = vmatmul.f32.gmra.mxu0 %v608
    %v630 = vpop.f32.mrf.mxu0
    %v631 = vadd.f32 0.0, %v630
    %632 = vdwg.mxu0
    %635 = vrot.lane.b32.xlu0 %v628, 24
    %v636 = vpop.permute.xlu0 %635
    %637 = vrot.lane.b32.xlu0 %v631, 24
    %v638 = vpop.permute.xlu0 %637
    %vm641 = vcmask 261312
    %642 = vst.msk [vmem:[#allocation2] sm:$0xff] %vm641, %v636
    %643 = vst.msk [vmem:[#allocation2 + $0x8] sm:$0xff] %vm641, %v638
    %v644 = vld [vmem:[#allocation2] sm:$0xff]
    %v645 = vld [vmem:[#allocation2 + $0x8] sm:$0xff]
    %v646 = vperm.slane %v79, 0
    %v648 = vsel %vm94, %v644, 0
    %v651 = vsel %vm94, %v645, 0
    %653 = vmatpush.msra.mxu0 0.0
    %654 = vmatpush.msra.mxu0 0.0
    %655 = vmatpush.msra.mxu0 0.0
    %656 = vmatpush.msra.mxu0 0.0
    %657 = vmatpush.msra.mxu0 0.0
    %658 = vmatpush.msra.mxu0 0.0
    %659 = vmatpush.msra.mxu0 0.0
    %660 = vmatpush.msra.mxu0 0.0
    %661 = vmatpush.msra.mxu0 0.0
    %662 = vmatpush.msra.mxu0 0.0
    %663 = vmatpush.msra.mxu0 0.0
    %664 = vmatpush.msra.mxu0 0.0
    %665 = vmatpush.msra.mxu0 %v78
    %666 = vmatpush.msra.mxu0 %v77
    %667 = vmatpush.msra.mxu0 %v76
    %668 = vmatpush.msra.mxu0 %v75
    %669 = vmatmul.f32.gmra.mxu0 %v648
    %v670 = vpop.f32.mrf.mxu0
    %v671 = vadd.f32 %v646, %v670
    %672 = vmatmul.f32.gmra.mxu0 %v651
    %v673 = vpop.f32.mrf.mxu0
    %v674 = vadd.f32 %v646, %v673
    %675 = vdwg.mxu0
    %v676 = vadd.f32 %v62, %v671
    %v677 = vadd.f32 %v63, %v674
    %v678 = vsel %vm94, %v676, 0.0
    %679 = vadd.xlane.f32.xlu0 %v678
    %v680 = vpop.xlane.xlu0 %679
    %v681 = vsel %vm94, %v677, 0.0
    %682 = vadd.xlane.f32.xlu0 %v681
    %v683 = vpop.xlane.xlu0 %682
    %v684 = vmul.f32 %v680, %v107
    %v685 = vmul.f32 %v683, %v107
    %v686 = vsub.f32 %v676, %v684
    %v687 = vsub.f32 %v677, %v685
    %v688 = vmul.f32 %v686, %v686
    %v689 = vmul.f32 %v687, %v687
    %v690 = vsel %vm94, %v688, 0.0
    %691 = vadd.xlane.f32.xlu0 %v690
    %v692 = vpop.xlane.xlu0 %691
    %v693 = vsel %vm94, %v689, 0.0
    %694 = vadd.xlane.f32.xlu0 %v693
    %v695 = vpop.xlane.xlu0 %694
    %v696 = vmul.f32 %v692, %v126
    %v697 = vmul.f32 %v695, %v126
    %v698 = vrsqrt.pop %v696
    %v699 = vmul.f32 %v698, %v696
    %v700 = vmul.f32 %v699, %v698
    %v701 = vmul.f32 0.5, %v700
    %v702 = vsub.f32 1.5, %v701
    %v703 = vmul.f32 %v698, %v702
    %v704 = vmul.f32 %v696, %v703
    %vm705 = vcmp.eq.f32.partialorder %v696, inf
    %v706 = vsel %vm705, %v696, %v704
    %vm707 = vcmp.eq.f32.partialorder %v696, 0.0
    %v708 = vand.u32 %v696, 2147483648
    %v709 = vsel %vm707, %v708, %v706
    %v710 = vrsqrt.pop %v697
    %v711 = vmul.f32 %v710, %v697
    %v712 = vmul.f32 %v711, %v710
    %v713 = vmul.f32 0.5, %v712
    %v714 = vsub.f32 1.5, %v713
    %v715 = vmul.f32 %v710, %v714
    %v716 = vmul.f32 %v697, %v715
    %vm717 = vcmp.eq.f32.partialorder %v697, inf
    %v718 = vsel %vm717, %v697, %v716
    %vm719 = vcmp.eq.f32.partialorder %v697, 0.0
    %v720 = vand.u32 %v697, 2147483648
    %v721 = vsel %vm719, %v720, %v718
    %v722 = vperm.slane %v68, 0
    %v723 = vmul.f32 %v722, %v686
    %v724 = vmul.f32 %v722, %v687
    %v725 = vadd.f32 %v709, 1e-06
    %v726 = vadd.f32 %v721, 1e-06
    %v727 = vrcp.pop %v725
    %v728 = vrcp.pop %v726
    %v729 = vmul.f32 %v725, %v727
    %v730 = vmul.f32 %v726, %v728
    %v731 = vsub.f32 2.0, %v729
    %v732 = vsub.f32 2.0, %v730
    %v733 = vmul.f32 %v727, %v731
    %v734 = vmul.f32 %v728, %v732
    %v735 = vmul.f32 %v723, %v733
    %v736 = vmul.f32 %v724, %v734
    %v737 = vperm.slane %v69, 0
    %v738 = vadd.f32 %v735, %v737
    %v739 = vadd.f32 %v736, %v737
    %v740 = vperm.slane %v84, 0
    %v742 = vsel %vm94, %v738, 0
    %v745 = vsel %vm94, %v739, 0
    %747 = vmatpush.msra.mxu0 0.0
    %748 = vmatpush.msra.mxu0 0.0
    %749 = vmatpush.msra.mxu0 0.0
    %750 = vmatpush.msra.mxu0 0.0
    %751 = vmatpush.msra.mxu0 0.0
    %752 = vmatpush.msra.mxu0 0.0
    %753 = vmatpush.msra.mxu0 0.0
    %754 = vmatpush.msra.mxu0 0.0
    %755 = vmatpush.msra.mxu0 0.0
    %756 = vmatpush.msra.mxu0 0.0
    %757 = vmatpush.msra.mxu0 0.0
    %758 = vmatpush.msra.mxu0 0.0
    %759 = vmatpush.msra.mxu0 %v83
    %760 = vmatpush.msra.mxu0 %v82
    %761 = vmatpush.msra.mxu0 %v81
    %762 = vmatpush.msra.mxu0 %v80
    %763 = vmatmul.f32.gmra.mxu0 %v742
    %v764 = vpop.f32.mrf.mxu0
    %v765 = vadd.f32 %v740, %v764
    %766 = vmatmul.f32.gmra.mxu0 %v745
    %v767 = vpop.f32.mrf.mxu0
    %v768 = vadd.f32 %v740, %v767
    %769 = vdwg.mxu0
    %v770 = vmax.f32 %v765, 0.0
    %v771 = vmax.f32 %v768, 0.0
    %v772 = vperm.slane %v93, 0
    %vm773 = vcmask 523264
    %v775 = vsel %vm773, %v770, 0
    %v778 = vsel %vm773, %v771, 0
    %780 = vmatpush.msra.mxu0 0.0
    %781 = vmatpush.msra.mxu0 0.0
    %782 = vmatpush.msra.mxu0 0.0
    %783 = vmatpush.msra.mxu0 0.0
    %784 = vmatpush.msra.mxu0 0.0
    %785 = vmatpush.msra.mxu0 0.0
    %786 = vmatpush.msra.mxu0 0.0
    %787 = vmatpush.msra.mxu0 0.0
    %788 = vmatpush.msra.mxu0 %v92
    %789 = vmatpush.msra.mxu0 %v91
    %790 = vmatpush.msra.mxu0 %v90
    %791 = vmatpush.msra.mxu0 %v89
    %792 = vmatpush.msra.mxu0 %v88
    %793 = vmatpush.msra.mxu0 %v87
    %794 = vmatpush.msra.mxu0 %v86
    %795 = vmatpush.msra.mxu0 %v85
    %796 = vmatmul.f32.gmra.mxu0 %v775
    %v797 = vpop.f32.mrf.mxu0
    %v798 = vadd.f32 %v772, %v797
    %799 = vmatmul.f32.gmra.mxu0 %v778
    %v800 = vpop.f32.mrf.mxu0
    %v801 = vadd.f32 %v772, %v800
    %802 = vdwg.mxu0
    %v803 = vadd.f32 %v676, %v798
    %v804 = vadd.f32 %v677, %v801
    %805 = vst.msk [vmem:[#allocation9] sm:$0xff] %vm94, %v803
    %806 = vst.msk [vmem:[#allocation9 + $0x8] sm:$0xff] %vm94, %v804
    // Predicated region
    $region26: #{tpu_custom_call.1} parent=1 // pred_check
      _
    $region27: #{tpu_custom_call.1} parent=1 // pred_check_branch
      %808 = sbr.rel (0) target = $region29
    $region28: #{tpu_custom_call.1} parent=1 // pred_region
      %810 = vsyncadd [#allocation5], 0
      %s811 = sshll.u32 [#allocation9], 4
      %s812 = int_to_ptr.vmem [resolvable:$true] %s811
      %s813 = sshll.u32 %s3, 4
      %s814 = int_to_ptr.hbm [resolvable:$true] %s813
      %819 = dma.vmem_to_hbm [thread:$0]  %s812, 256, %s814, [#allocation5], 128, 128, 8
    $region29: #{tpu_custom_call.1} parent=1 // pred_fallthru
      _
    // Predicated region
    $region30: #{tpu_custom_call.1} parent=1 // pred_check
      _
    $region31: #{tpu_custom_call.1} parent=1 // pred_check_branch
      %821 = sbr.rel (0) target = $region33
    $region32: #{tpu_custom_call.1} parent=1 // pred_region
      %823 = dma.done [#allocation5], 256
    $region33: #{tpu_custom_call.1} parent=1 // pred_fallthru
      _
    %824 = vsyncpa [#allocation4], 1
    %825 = vsyncpa [#allocation7], 1
    %826 = vsyncpa [#allocation5], 1

</llo_original>
